<compile_context>
chip_gen: v5e
topology: v5e:2x2
jax: 0.10.0
libtpu: 0.0.40
codegen_flags: <defaults>
</compile_context>

<pallas_src>
import jax
import jax.numpy as jnp
from jax.experimental import pallas as pl
from jax.experimental.pallas import tpu as pltpu


def _round_up(x, m):
    return ((x + m - 1) // m) * m


def mapnet_kernel(x_ref, w_in_ref, w_out_ref, o_ref, acc_ref):
    """One (row-tile, mid-tile) step of MapNet: gelu(x @ W_in) @ W_out + x."""
    k = pl.program_id(1)

    @pl.when(k == 0)
    def _init():
        acc_ref[...] = jnp.zeros_like(acc_ref)

    # Native-dtype operands (bf16 stays bf16), f32 accumulation on the MXU.
    h = jnp.dot(x_ref[...], w_in_ref[...], preferred_element_type=jnp.float32)
    h = jax.nn.gelu(h)  # elementwise in the mid dim -> mid-tiling is exact
    acc_ref[...] += jnp.dot(h.astype(w_out_ref.dtype), w_out_ref[...],
                            preferred_element_type=jnp.float32)

    @pl.when(k == pl.num_programs(1) - 1)
    def _finalize():
        o_ref[...] = (acc_ref[...] + x_ref[...].astype(jnp.float32)
                      ).astype(o_ref.dtype)


def mapnet_forward(doc_rep, mask, w_in, w_out, *, tm=256, tk=1024):
    """MapNet.forward(doc_rep, mask) -> gelu(doc_rep @ W_in) @ W_out + doc_rep.

    `mask` is accepted for API parity with the PyTorch module; MapNet.forward
    never uses it (same as the reference implementation).
    """
    del mask
    B, S, H = doc_rep.shape
    H_in, Hm = w_in.shape
    assert H_in == H and w_out.shape == (Hm, H)
    M = B * S

    # Row tile: large (MXU-friendly) when there is enough work; pad the tail.
    tm = min(tm, _round_up(M, 8))
    M_pad = _round_up(M, tm)
    # Mid-dim (reduction) tile: keeps weight residency within VMEM at scale.
    tk = min(tk, Hm)
    Hm_pad = _round_up(Hm, tk)

    x2d = doc_rep.reshape(M, H)
    if M_pad != M:
        x2d = jnp.pad(x2d, ((0, M_pad - M), (0, 0)))
    w_in_p, w_out_p = w_in, w_out
    if Hm_pad != Hm:
        # Zero-padded mid columns/rows contribute exactly zero to the output.
        w_in_p = jnp.pad(w_in, ((0, 0), (0, Hm_pad - Hm)))
        w_out_p = jnp.pad(w_out, ((0, Hm_pad - Hm), (0, 0)))

    grid = (M_pad // tm, Hm_pad // tk)

    # VMEM budget: double-buffered x / W_in / W_out / out tiles + f32 acc.
    bytes_x = x2d.dtype.itemsize
    bytes_w = jnp.dtype(w_in_p.dtype).itemsize
    bytes_o = jnp.dtype(doc_rep.dtype).itemsize
    working = (2 * tm * H * bytes_x          # x row tile
               + 2 * H * tk * bytes_w        # W_in mid tile
               + 2 * tk * H * bytes_w        # W_out mid tile
               + 2 * tm * H * bytes_o        # output tile
               + tm * H * 4)                 # f32 accumulator scratch
    vmem_limit = int(min(max(working * 1.3, 32 * 2**20), 64 * 2**20))

    cost = pl.CostEstimate(
        flops=4 * M * H * Hm,                # two matmuls
        transcendentals=M * Hm,              # gelu
        bytes_accessed=(M * H * bytes_x + M * H * bytes_o
                        + H * Hm * bytes_w + Hm * H * bytes_w),
    )

    out2d = pl.pallas_call(
        mapnet_kernel,
        out_shape=jax.ShapeDtypeStruct((M_pad, H), doc_rep.dtype),
        grid_spec=pltpu.PrefetchScalarGridSpec(
            num_scalar_prefetch=0,
            grid=grid,
            in_specs=[
                pl.BlockSpec((tm, H), lambda i, k: (i, 0)),   # x (resident over k)
                pl.BlockSpec((H, tk), lambda i, k: (0, k)),   # W_in mid-tile
                pl.BlockSpec((tk, H), lambda i, k: (k, 0)),   # W_out mid-tile
            ],
            out_specs=pl.BlockSpec((tm, H), lambda i, k: (i, 0)),
            scratch_shapes=[pltpu.VMEM((tm, H), jnp.float32)],
        ),
        compiler_params=pltpu.CompilerParams(
            dimension_semantics=("parallel", "arbitrary"),
            vmem_limit_bytes=vmem_limit,
        ),
        cost_estimate=cost,
    )(x2d, w_in_p, w_out_p)

    return out2d[:M].reshape(B, S, H)


def init_mapnet_params(key, hidden_size, mid_ratio=2, init_std=0.02,
                       dtype=jnp.float32):
    """Deterministic stand-in for bmt.init_parameters(self.doc_plug_mapper).

    MLP(hidden, hidden, dim_mid=2*hidden, init_std=0.02, bias=False):
      w_in : (H, 2H),  w_out : (2H, H), both ~ N(0, 0.02^2), no bias.
    """
    dim_mid = int(hidden_size * mid_ratio)
    k1, k2 = jax.random.split(key)
    w_in = (jax.random.normal(k1, (hidden_size, dim_mid)) * init_std).astype(dtype)
    w_out = (jax.random.normal(k2, (dim_mid, hidden_size)) * init_std).astype(dtype)
    return w_in, w_out


def generate_doc_plug(last_hidden_state, attention_mask, w_in, w_out):
    """PlugD.generate_doc_plug hot path: doc_plug_mapper(last_hidden, mask)."""
    # TODO(synk): Llama backbone forward (self.backbone(...)) not implemented —
    # requires a pretrained checkpoint and a full transformer; out of scope.
    return mapnet_forward(last_hidden_state, attention_mask, w_in, w_out)


def _reference(doc_rep, w_in, w_out):
    h = jax.nn.gelu(doc_rep.astype(jnp.float32) @ w_in.astype(jnp.float32))
    return (h @ w_out.astype(jnp.float32) + doc_rep).astype(doc_rep.dtype)


if __name__ == "__main__":
    # Small synthetic shapes: batch=2, seq=8, hidden=32 (mid=64).
    B, S, H = 2, 8, 32
    key = jax.random.PRNGKey(0)
    k_x, k_p = jax.random.split(key)

    last_hidden = jax.random.normal(k_x, (B, S, H), dtype=jnp.float32)
    attention_mask = jnp.ones((B, S), dtype=jnp.int32)
    w_in, w_out = init_mapnet_params(k_p, H)

    doc_plug = generate_doc_plug(last_hidden, attention_mask, w_in, w_out)
    doc_plug = jax.block_until_ready(doc_plug)

    ref = _reference(last_hidden, w_in, w_out)
    assert doc_plug.shape == (B, S, H)
    assert jnp.allclose(doc_plug, ref, atol=1e-4, rtol=1e-4), (
        float(jnp.max(jnp.abs(doc_plug - ref))))

    print("KERNEL_OK")
</pallas_src>

<mosaic_0001>
module attributes {stable_mosaic.version = 11 : i64} {
  func.func @mapnet_kernel(%arg0: i32, %arg1: i32, %arg2: memref<16x32xf32, #tpu.memory_space<vmem>>, %arg3: memref<32x64xf32, #tpu.memory_space<vmem>>, %arg4: memref<64x32xf32, #tpu.memory_space<vmem>>, %arg5: memref<16x32xf32, #tpu.memory_space<vmem>>, %arg6: memref<16x32xf32, #tpu.memory_space<vmem>>) attributes {dimension_semantics = [#tpu.dimension_semantics<parallel>, #tpu.dimension_semantics<arbitrary>], iteration_bounds = array<i64: 1, 1>, scalar_prefetch = 0 : i64, scratch_operands = 1 : i64, tpu.core_type = #tpu.core_type<tc>, window_params = [{transform_indices = @transform_0, window_bounds = array<i64: 16, 32>}, {transform_indices = @transform_1, window_bounds = array<i64: 32, 64>}, {transform_indices = @transform_2, window_bounds = array<i64: 64, 32>}, {transform_indices = @transform_3, window_bounds = array<i64: 16, 32>}]} {
    %c0_i32 = arith.constant 0 : i32
    %0 = arith.cmpi eq, %arg1, %c0_i32 : i32
    %1 = arith.extui %0 : i1 to i32
    %c0_i32_0 = arith.constant 0 : i32
    %2 = arith.cmpi ne, %1, %c0_i32_0 : i32
    scf.if %2 {
      %cst_17 = arith.constant 0.000000e+00 : f32
      %27 = vector.broadcast %cst_17 : f32 to vector<16x32xf32>
      %c0_18 = arith.constant 0 : index
      %c0_19 = arith.constant 0 : index
      %28 = vector.load %arg6[%c0_18, %c0_19] : memref<16x32xf32, #tpu.memory_space<vmem>>, vector<16x32xf32>
      tpu.vector_store %arg6[%c0_18, %c0_19], %27 {strides = array<i32>} : memref<16x32xf32, #tpu.memory_space<vmem>>, vector<16x32xf32>,
    } else {
    }
    %c0 = arith.constant 0 : index
    %c0_1 = arith.constant 0 : index
    %3 = vector.load %arg2[%c0, %c0_1] : memref<16x32xf32, #tpu.memory_space<vmem>>, vector<16x32xf32>
    %c0_2 = arith.constant 0 : index
    %c0_3 = arith.constant 0 : index
    %4 = vector.load %arg3[%c0_2, %c0_3] : memref<32x64xf32, #tpu.memory_space<vmem>>, vector<32x64xf32>
    %cst = arith.constant dense<0.000000e+00> : vector<16x64xf32>
    %5 = tpu.matmul %3, %4, %cst {dimension_numbers = #tpu.dot_dimension_numbers<[1], [0], [0], [1], [0, 0, 1, 1], [], []>} : vector<16x32xf32>, vector<32x64xf32>, vector<16x64xf32> -> vector<16x64xf32>
    %6 = arith.mulf %5, %5 : vector<16x64xf32>
    %7 = arith.mulf %5, %6 : vector<16x64xf32>
    %cst_4 = arith.constant 4.471500e-02 : f32
    %8 = vector.broadcast %cst_4 : f32 to vector<16x64xf32>
    %9 = arith.mulf %8, %7 : vector<16x64xf32>
    %10 = arith.addf %5, %9 : vector<16x64xf32>
    %cst_5 = arith.constant 0.797884583 : f32
    %11 = vector.broadcast %cst_5 : f32 to vector<16x64xf32>
    %12 = arith.mulf %11, %10 : vector<16x64xf32>
    %13 = math.tanh %12 : vector<16x64xf32>
    %cst_6 = arith.constant 1.000000e+00 : f32
    %14 = vector.broadcast %cst_6 : f32 to vector<16x64xf32>
    %15 = arith.addf %14, %13 : vector<16x64xf32>
    %cst_7 = arith.constant 5.000000e-01 : f32
    %16 = vector.broadcast %cst_7 : f32 to vector<16x64xf32>
    %17 = arith.mulf %16, %15 : vector<16x64xf32>
    %18 = arith.mulf %5, %17 : vector<16x64xf32>
    %c0_8 = arith.constant 0 : index
    %c0_9 = arith.constant 0 : index
    %19 = vector.load %arg6[%c0_8, %c0_9] : memref<16x32xf32, #tpu.memory_space<vmem>>, vector<16x32xf32>
    %c0_10 = arith.constant 0 : index
    %c0_11 = arith.constant 0 : index
    %20 = vector.load %arg4[%c0_10, %c0_11] : memref<64x32xf32, #tpu.memory_space<vmem>>, vector<64x32xf32>
    %cst_12 = arith.constant dense<0.000000e+00> : vector<16x32xf32>
    %21 = tpu.matmul %18, %20, %cst_12 {dimension_numbers = #tpu.dot_dimension_numbers<[1], [0], [0], [1], [0, 0, 1, 1], [], []>} : vector<16x64xf32>, vector<64x32xf32>, vector<16x32xf32> -> vector<16x32xf32>
    %22 = arith.addf %19, %21 : vector<16x32xf32>
    %c0_13 = arith.constant 0 : index
    %c0_14 = arith.constant 0 : index
    %23 = vector.load %arg6[%c0_13, %c0_14] : memref<16x32xf32, #tpu.memory_space<vmem>>, vector<16x32xf32>
    tpu.vector_store %arg6[%c0_13, %c0_14], %22 {strides = array<i32>} : memref<16x32xf32, #tpu.memory_space<vmem>>, vector<16x32xf32>,
    %c0_i32_15 = arith.constant 0 : i32
    %24 = arith.cmpi eq, %arg1, %c0_i32_15 : i32
    %25 = arith.extui %24 : i1 to i32
    %c0_i32_16 = arith.constant 0 : i32
    %26 = arith.cmpi ne, %25, %c0_i32_16 : i32
    scf.if %26 {
      %c0_17 = arith.constant 0 : index
      %c0_18 = arith.constant 0 : index
      %27 = vector.load %arg6[%c0_17, %c0_18] : memref<16x32xf32, #tpu.memory_space<vmem>>, vector<16x32xf32>
      %c0_19 = arith.constant 0 : index
      %c0_20 = arith.constant 0 : index
      %28 = vector.load %arg2[%c0_19, %c0_20] : memref<16x32xf32, #tpu.memory_space<vmem>>, vector<16x32xf32>
      %29 = arith.addf %27, %28 : vector<16x32xf32>
      %c0_21 = arith.constant 0 : index
      %c0_22 = arith.constant 0 : index
      %30 = vector.load %arg5[%c0_21, %c0_22] : memref<16x32xf32, #tpu.memory_space<vmem>>, vector<16x32xf32>
      tpu.vector_store %arg5[%c0_21, %c0_22], %29 {strides = array<i32>} : memref<16x32xf32, #tpu.memory_space<vmem>>, vector<16x32xf32>,
    } else {
    }
    return
  }
  func.func @transform_0(%arg0: i32, %arg1: i32) -> (i32, i32) {
    %c0_i32 = arith.constant 0 : i32
    %c0_i32_0 = arith.constant 0 : i32
    return %arg0, %c0_i32 : i32, i32
  }
  func.func @transform_1(%arg0: i32, %arg1: i32) -> (i32, i32) {
    %c0_i32 = arith.constant 0 : i32
    %c0_i32_0 = arith.constant 0 : i32
    return %c0_i32, %arg1 : i32, i32
  }
  func.func @transform_2(%arg0: i32, %arg1: i32) -> (i32, i32) {
    %c0_i32 = arith.constant 0 : i32
    %c0_i32_0 = arith.constant 0 : i32
    return %arg1, %c0_i32 : i32, i32
  }
  func.func @transform_3(%arg0: i32, %arg1: i32) -> (i32, i32) {
    %c0_i32 = arith.constant 0 : i32
    %c0_i32_0 = arith.constant 0 : i32
    return %arg0, %c0_i32 : i32, i32
  }
}

</mosaic_0001>

<llo_original>
// kernel: tpu_custom_call.1
$region0: #{tpu_custom_call.1}
  #allocation0 [shape = 'u32[]', space=smem, size = 0x4, offset = 0x4, fixed_abs, tag = 'smem constant byte address 0x4 - core index']
  #allocation1 [shape = 'u32[72,128]{1,0:T(1,128)}', space=vmem, size = 0x9000, scoped, tag = 'internal scratch']
  #allocation2 [shape = 'f32[16,32]{1,0:T(8,128)}', space=vmem, size = 0x2000, scoped, tag = 'scratch operand']
  %s0 = inlined_call_operand.vmem [shape: f32[16,32], index: 0, kind: input, shape index: {}]
  %s1 = inlined_call_operand.vmem [shape: f32[32,64], index: 1, kind: input, shape index: {}]
  %s2 = inlined_call_operand.vmem [shape: f32[64,32], index: 2, kind: input, shape index: {}]
  %s3 = inlined_call_operand.hbm [shape: f32[16,32], index: 3, kind: output, shape index: {}]
  %s4 = sld [smem:[#allocation0]]
  $region30: #{tpu_custom_call.1} parent=0
    _
  %s6 = ssub.s32 1, %s4
  %s7 = scalar_select 0, %s6, %s4
  $region1: #{tpu_custom_call.1} parent=0
    #allocation3 [shape = 'u8[8192]{0}', space=vmem, size = 0x2000, scoped, tag = 'output window, operand 0, single buffered']
    #allocation4 [shape = 's32[1]{0}', space=sflag, size = 0x4, scoped, tag = 'scoped memory for tpu_custom_call.1']
    %8 = vsyncpa [#allocation4], 0
    // Predicated region
    $region2: #{tpu_custom_call.1} parent=1 // pred_check
      _
    $region3: #{tpu_custom_call.1} parent=1 // pred_check_branch
      %10 = sbr.rel (0) target = $region5
    $region4: #{tpu_custom_call.1} parent=1 // pred_region
      _
    $region5: #{tpu_custom_call.1} parent=1 // pred_fallthru
      _
    // Predicated region
    $region6: #{tpu_custom_call.1} parent=1 // pred_check
      _
    $region7: #{tpu_custom_call.1} parent=1 // pred_check_branch
      %12 = sbr.rel (0) target = $region9
    $region8: #{tpu_custom_call.1} parent=1 // pred_region
      _
    $region9: #{tpu_custom_call.1} parent=1 // pred_fallthru
      _
    // Predicated region
    $region10: #{tpu_custom_call.1} parent=1 // pred_check
      _
    $region11: #{tpu_custom_call.1} parent=1 // pred_check_branch
      %14 = sbr.rel (0) target = $region13
    $region12: #{tpu_custom_call.1} parent=1 // pred_region
      _
    $region13: #{tpu_custom_call.1} parent=1 // pred_fallthru
      _
    %p15 = scmp.eq.s32.totalorder 0, 0
    // Predicated region
    $region14: #{tpu_custom_call.1} parent=1 // pred_check
      %p16 = pneg %p15
    $region15: #{tpu_custom_call.1} parent=1 // pred_check_branch
      %18 = sbr.rel (%p16) target = $region17
    $region16: #{tpu_custom_call.1} parent=1 // pred_region
      %vm19 = vcmask 261120
      %20 = vst.msk [vmem:[#allocation2] sm:$0xff] %vm19, 0.0
      %21 = vst.msk [vmem:[#allocation2 + $0x8] sm:$0xff] %vm19, 0.0
    $region17: #{tpu_custom_call.1} parent=1 // pred_fallthru
      _
    %v22 = vld [vmem:[%s0] sm:$0xff]
    %v23 = vld [vmem:[%s0 + $0x8] sm:$0xff]
    %v24 = vld [vmem:[%s1] sm:$0xff]
    %v25 = vld [vmem:[%s1 + $0x8] sm:$0xff]
    %v26 = vld [vmem:[%s1 + $0x10] sm:$0xff]
    %v27 = vld [vmem:[%s1 + $0x18] sm:$0xff]
    %vm28 = vcmask 261120
    %v30 = vsel %vm28, %v22, 0
    %v33 = vsel %vm28, %v23, 0
    %35 = vmatpush.msra.mxu0 0.0
    %36 = vmatpush.msra.mxu0 0.0
    %37 = vmatpush.msra.mxu0 0.0
    %38 = vmatpush.msra.mxu0 0.0
    %39 = vmatpush.msra.mxu0 0.0
    %40 = vmatpush.msra.mxu0 0.0
    %41 = vmatpush.msra.mxu0 0.0
    %42 = vmatpush.msra.mxu0 0.0
    %43 = vmatpush.msra.mxu0 0.0
    %44 = vmatpush.msra.mxu0 0.0
    %45 = vmatpush.msra.mxu0 0.0
    %46 = vmatpush.msra.mxu0 0.0
    %47 = vmatpush.msra.mxu0 %v27
    %48 = vmatpush.msra.mxu0 %v26
    %49 = vmatpush.msra.mxu0 %v25
    %50 = vmatpush.msra.mxu0 %v24
    %51 = vmatmul.f32.gmra.mxu0 %v30
    %v52 = vpop.f32.mrf.mxu0
    %v53 = vadd.f32 0.0, %v52
    %54 = vmatmul.f32.gmra.mxu0 %v33
    %v55 = vpop.f32.mrf.mxu0
    %v56 = vadd.f32 0.0, %v55
    %57 = vdwg.mxu0
    %v58 = vmul.f32 %v53, %v53
    %v59 = vmul.f32 %v56, %v56
    %v60 = vmul.f32 %v53, %v58
    %v61 = vmul.f32 %v56, %v59
    %v62 = vmul.f32 %v60, 0.044715
    %v63 = vmul.f32 %v61, 0.044715
    %v64 = vadd.f32 %v53, %v62
    %v65 = vadd.f32 %v56, %v63
    %v66 = vmul.f32 %v64, 0.7978846
    %v67 = vmul.f32 %v65, 0.7978846
    %v68 = vtanh.pop %v66
    %v69 = vtanh.pop %v67
    %v70 = vadd.f32 %v68, 1.0
    %v71 = vadd.f32 %v69, 1.0
    %v72 = vmul.f32 %v70, 0.5
    %v73 = vmul.f32 %v71, 0.5
    %v74 = vmul.f32 %v53, %v72
    %v75 = vmul.f32 %v56, %v73
    %v76 = vld [vmem:[#allocation2] sm:$0xff]
    %v77 = vld [vmem:[#allocation2 + $0x8] sm:$0xff]
    %v78 = vld [vmem:[%s2] sm:$0xff]
    %v79 = vld [vmem:[%s2 + $0x8] sm:$0xff]
    %v80 = vld [vmem:[%s2 + $0x10] sm:$0xff]
    %v81 = vld [vmem:[%s2 + $0x18] sm:$0xff]
    %v82 = vld [vmem:[%s2 + $0x20] sm:$0xff]
    %v83 = vld [vmem:[%s2 + $0x28] sm:$0xff]
    %v84 = vld [vmem:[%s2 + $0x30] sm:$0xff]
    %v85 = vld [vmem:[%s2 + $0x38] sm:$0xff]
    %vm86 = vcmask 523264
    %v88 = vsel %vm86, %v74, 0
    %v91 = vsel %vm86, %v75, 0
    %93 = vmatpush.msra.mxu0 0.0
    %94 = vmatpush.msra.mxu0 0.0
    %95 = vmatpush.msra.mxu0 0.0
    %96 = vmatpush.msra.mxu0 0.0
    %97 = vmatpush.msra.mxu0 0.0
    %98 = vmatpush.msra.mxu0 0.0
    %99 = vmatpush.msra.mxu0 0.0
    %100 = vmatpush.msra.mxu0 0.0
    %101 = vmatpush.msra.mxu0 %v85
    %102 = vmatpush.msra.mxu0 %v84
    %103 = vmatpush.msra.mxu0 %v83
    %104 = vmatpush.msra.mxu0 %v82
    %105 = vmatpush.msra.mxu0 %v81
    %106 = vmatpush.msra.mxu0 %v80
    %107 = vmatpush.msra.mxu0 %v79
    %108 = vmatpush.msra.mxu0 %v78
    %109 = vmatmul.f32.gmra.mxu0 %v88
    %v110 = vpop.f32.mrf.mxu0
    %v111 = vadd.f32 0.0, %v110
    %112 = vmatmul.f32.gmra.mxu0 %v91
    %v113 = vpop.f32.mrf.mxu0
    %v114 = vadd.f32 0.0, %v113
    %115 = vdwg.mxu0
    %v116 = vadd.f32 %v76, %v111
    %v117 = vadd.f32 %v77, %v114
    %118 = vst.msk [vmem:[#allocation2] sm:$0xff] %vm28, %v116
    %119 = vst.msk [vmem:[#allocation2 + $0x8] sm:$0xff] %vm28, %v117
    // Predicated region
    $region18: #{tpu_custom_call.1} parent=1 // pred_check
      %p120 = pneg %p15
    $region19: #{tpu_custom_call.1} parent=1 // pred_check_branch
      %122 = sbr.rel (%p120) target = $region21
    $region20: #{tpu_custom_call.1} parent=1 // pred_region
      %v123 = vld [vmem:[#allocation2] sm:$0xff]
      %v124 = vld [vmem:[#allocation2 + $0x8] sm:$0xff]
      %v125 = vld [vmem:[%s0] sm:$0xff]
      %v126 = vld [vmem:[%s0 + $0x8] sm:$0xff]
      %v127 = vadd.f32 %v123, %v125
      %v128 = vadd.f32 %v124, %v126
      %129 = vst.msk [vmem:[#allocation3] sm:$0xff] %vm28, %v127
      %130 = vst.msk [vmem:[#allocation3 + $0x8] sm:$0xff] %vm28, %v128
    $region21: #{tpu_custom_call.1} parent=1 // pred_fallthru
      _
    // Predicated region
    $region22: #{tpu_custom_call.1} parent=1 // pred_check
      _
    $region23: #{tpu_custom_call.1} parent=1 // pred_check_branch
      %132 = sbr.rel (0) target = $region25
    $region24: #{tpu_custom_call.1} parent=1 // pred_region
      %134 = vsyncadd [#allocation4], 0
      %s135 = sshll.u32 [#allocation3], 4
      %s136 = int_to_ptr.vmem [resolvable:$true] %s135
      %s137 = sshll.u32 %s3, 4
      %s138 = int_to_ptr.hbm [resolvable:$true] %s137
      %143 = dma.vmem_to_hbm [thread:$0]  %s136, 256, %s138, [#allocation4], 128, 128, 8
    $region25: #{tpu_custom_call.1} parent=1 // pred_fallthru
      _
    // Predicated region
    $region26: #{tpu_custom_call.1} parent=1 // pred_check
      _
    $region27: #{tpu_custom_call.1} parent=1 // pred_check_branch
      %145 = sbr.rel (0) target = $region29
    $region28: #{tpu_custom_call.1} parent=1 // pred_region
      %147 = dma.done [#allocation4], 256
    $region29: #{tpu_custom_call.1} parent=1 // pred_fallthru
      _
    %148 = vsyncpa [#allocation4], 1

</llo_original>
